<compile_context>
chip_gen: v5e
topology: v5e:2x2
jax: 0.10.0
libtpu: 0.0.40
codegen_flags: <defaults>
</compile_context>

<pallas_src>
import jax
import jax.numpy as jnp
from jax.experimental import pallas as pl
from jax.experimental.pallas import tpu as pltpu

_LANE_CANDIDATES = (2048, 1024, 512, 256, 128)   # lane-dense last-dim widths
_TARGET_BLOCK_BYTES = 4 * 1024 * 1024            # ~4 MiB per block
_VMEM_LIMIT_BYTES = 32 * 1024 * 1024             # safe on v5e/v6e/v7x
_SUBLANE = {4: 8, 2: 16, 1: 32}                  # itemsize -> sublane packing


def _hard_sigmoid_kernel(x_ref, o_ref):
    # Compute in f32 regardless of storage dtype; cast back at the store.
    x = x_ref[...].astype(jnp.float32)
    # PyTorch module multiplies by the literal 0.16667 (not exactly 1/6).
    y = jnp.clip(x + 3.0, 0.0, 6.0) * 0.16667
    o_ref[...] = y.astype(o_ref.dtype)


def _round_up(a, b):
    return pl.cdiv(a, b) * b


def _hard_sigmoid_2d(x2d):
    """Run the kernel on a lane-dense (rows, lanes) slab."""
    rows, lanes = x2d.shape
    itemsize = jnp.dtype(x2d.dtype).itemsize
    sub = _SUBLANE.get(itemsize, 8)

    # Constant-byte tiling: keep each block ~4 MiB independent of dtype.
    max_tile_r = max(_round_up(_TARGET_BLOCK_BYTES // (lanes * itemsize), sub), sub)

    if rows < 2 * sub:
        # Tiny input: single full-extent block (satisfies the (8,128) rule
        # because the block equals the full row extent).
        tile_r = rows
    elif rows <= max_tile_r:
        # Medium input: split into >=2 blocks so both v7x TensorCores work.
        tile_r = _round_up(pl.cdiv(rows, 2), sub)
    else:
        tile_r = max_tile_r

    grid = (pl.cdiv(rows, tile_r),)
    return pl.pallas_call(
        _hard_sigmoid_kernel,
        out_shape=jax.ShapeDtypeStruct((rows, lanes), x2d.dtype),
        grid=grid,
        in_specs=[pl.BlockSpec((tile_r, lanes), lambda i: (i, 0))],
        out_specs=pl.BlockSpec((tile_r, lanes), lambda i: (i, 0)),
        compiler_params=pltpu.CompilerParams(
            dimension_semantics=("parallel",),
            vmem_limit_bytes=_VMEM_LIMIT_BYTES,
        ),
    )(x2d)


@jax.jit
def hard_sigmoid(x):
    """Apply HardSigmoid elementwise. Accepts any shape (NCHW in the demo)."""
    orig_shape = x.shape
    n = x.size

    lanes = next((l for l in _LANE_CANDIDATES if n % l == 0), None)
    if lanes is not None:
        # Zero-copy reshape to a lane-dense slab; no pad, no trailing slice.
        out = _hard_sigmoid_2d(x.reshape(n // lanes, lanes))
        return out.reshape(orig_shape)

    # Rare fallback: total size not a multiple of 128 -> pad to 128 lanes.
    # TODO(synk): this path costs one extra HBM pass (pad + slice); it is only
    # hit for sizes that are not multiples of 128.
    lanes = 128
    n_pad = _round_up(n, lanes)
    flat = jnp.pad(x.reshape(n), (0, n_pad - n))
    out = _hard_sigmoid_2d(flat.reshape(n_pad // lanes, lanes))
    return out.reshape(n_pad)[:n].reshape(orig_shape)


if __name__ == "__main__":
    key = jax.random.PRNGKey(0)
    # NCHW input like a MobileNetV3 feature map (small synthetic shape).
    x = jax.random.normal(key, (2, 4, 16, 16), dtype=jnp.float32) * 4.0

    y = jax.block_until_ready(hard_sigmoid(x))

    # Reference check in plain JAX (same literal constants as the module).
    y_ref = jnp.clip(x + 3.0, 0.0, 6.0) * 0.16667
    assert y.shape == x.shape and y.dtype == x.dtype
    assert jnp.allclose(y, y_ref, atol=1e-6, rtol=1e-6)

    print("KERNEL_OK")
</pallas_src>

<mosaic_0001>
module attributes {stable_mosaic.version = 11 : i64} {
  func.func @_hard_sigmoid_kernel(%arg0: i32, %arg1: memref<1x2048xf32, #tpu.memory_space<vmem>>, %arg2: memref<1x2048xf32, #tpu.memory_space<vmem>>) attributes {dimension_semantics = [#tpu.dimension_semantics<parallel>], iteration_bounds = array<i64: 1>, scalar_prefetch = 0 : i64, scratch_operands = 0 : i64, tpu.core_type = #tpu.core_type<tc>, window_params = [{transform_indices = @transform_0, window_bounds = array<i64: 1, 2048>}, {transform_indices = @transform_1, window_bounds = array<i64: 1, 2048>}]} {
    %c0 = arith.constant 0 : index
    %c0_0 = arith.constant 0 : index
    %0 = vector.load %arg1[%c0, %c0_0] : memref<1x2048xf32, #tpu.memory_space<vmem>>, vector<1x2048xf32>
    %cst = arith.constant 3.000000e+00 : f32
    %1 = vector.broadcast %cst : f32 to vector<1x2048xf32>
    %2 = arith.addf %0, %1 : vector<1x2048xf32>
    %cst_1 = arith.constant 0.000000e+00 : f32
    %cst_2 = arith.constant 6.000000e+00 : f32
    %3 = vector.broadcast %cst_1 : f32 to vector<1x2048xf32>
    %4 = arith.maximumf %3, %2 : vector<1x2048xf32>
    %5 = vector.broadcast %cst_2 : f32 to vector<1x2048xf32>
    %6 = arith.minimumf %5, %4 : vector<1x2048xf32>
    %cst_3 = arith.constant 1.666700e-01 : f32
    %7 = vector.broadcast %cst_3 : f32 to vector<1x2048xf32>
    %8 = arith.mulf %6, %7 : vector<1x2048xf32>
    %c0_4 = arith.constant 0 : index
    %c0_5 = arith.constant 0 : index
    %9 = vector.load %arg2[%c0_4, %c0_5] : memref<1x2048xf32, #tpu.memory_space<vmem>>, vector<1x2048xf32>
    tpu.vector_store %arg2[%c0_4, %c0_5], %8 {strides = array<i32>} : memref<1x2048xf32, #tpu.memory_space<vmem>>, vector<1x2048xf32>,
    return
  }
  func.func @transform_0(%arg0: i32) -> (i32, i32) {
    %c0_i32 = arith.constant 0 : i32
    %c0_i32_0 = arith.constant 0 : i32
    return %arg0, %c0_i32 : i32, i32
  }
  func.func @transform_1(%arg0: i32) -> (i32, i32) {
    %c0_i32 = arith.constant 0 : i32
    %c0_i32_0 = arith.constant 0 : i32
    return %arg0, %c0_i32 : i32, i32
  }
}

</mosaic_0001>

<llo_original>
// kernel: hard_sigmoid.1
$region0: #{hard_sigmoid.1}
  #allocation0 [shape = 'u32[]', space=smem, size = 0x4, offset = 0x4, fixed_abs, tag = 'smem constant byte address 0x4 - core index']
  #allocation1 [shape = 'u32[72,128]{1,0:T(1,128)}', space=vmem, size = 0x9000, scoped, tag = 'internal scratch']
  %s0 = inlined_call_operand.vmem [shape: f32[1,2048], index: 0, kind: input, shape index: {}]
  %s1 = inlined_call_operand.vmem [shape: f32[1,2048], index: 1, kind: output, shape index: {}]
  %s2 = sld [smem:[#allocation0]]
  $region14: #{hard_sigmoid.1} parent=0
    _
  %s4 = ssub.s32 1, %s2
  %s5 = scalar_select 0, %s4, %s2
  // Predicated region
  $region2: #{hard_sigmoid.1} parent=0 // pred_check
    _
  $region3: #{hard_sigmoid.1} parent=0 // pred_check_branch
    %7 = sbr.rel (0) target = $region5
  $region4: #{hard_sigmoid.1} parent=0 // pred_region
    _
  $region5: #{hard_sigmoid.1} parent=0 // pred_fallthru
    _
  %v8 = vld [vmem:[%s0] sm:$0xff]
  %v9 = vld [vmem:[%s0 + $0x8] sm:$0xff]
  %v10 = vadd.f32 %v8, 3.0
  %v11 = vadd.f32 %v9, 3.0
  %v12 = vmax.f32 %v10, 0.0
  %v13 = vmax.f32 %v11, 0.0
  %v14 = vmin.f32 %v12, 6.0
  %v15 = vmin.f32 %v13, 6.0
  %v16 = vmul.f32 %v14, 0.16667
  %v17 = vmul.f32 %v15, 0.16667
  %18 = vst [vmem:[%s1] sm:$0xff] %v16
  %19 = vst [vmem:[%s1 + $0x8] sm:$0xff] %v17
  // Predicated region
  $region6: #{hard_sigmoid.1} parent=0 // pred_check
    _
  $region7: #{hard_sigmoid.1} parent=0 // pred_check_branch
    %21 = sbr.rel (0) target = $region9
  $region8: #{hard_sigmoid.1} parent=0 // pred_region
    _
  $region9: #{hard_sigmoid.1} parent=0 // pred_fallthru
    _
  // Predicated region
  $region10: #{hard_sigmoid.1} parent=0 // pred_check
    _
  $region11: #{hard_sigmoid.1} parent=0 // pred_check_branch
    %23 = sbr.rel (0) target = $region13
  $region12: #{hard_sigmoid.1} parent=0 // pred_region
    _
  $region13: #{hard_sigmoid.1} parent=0 // pred_fallthru
    _

</llo_original>
